<compile_context>
chip_gen: v6e
topology: v6e:2x2x1
jax: 0.10.0
libtpu: 0.0.40
codegen_flags: <defaults>
</compile_context>

<pallas_src>
import math

import jax
import jax.numpy as jnp
from jax import lax
from jax.experimental import pallas as pl
from jax.experimental.pallas import tpu as pltpu


# ------------------------------------------------------------------ parameters
def _gaussian_1d(kernel_size, sigma):
    """1-D gaussian factor normalized to sum to 1 (GBlur's 2-D kernel is the
    outer product of two of these)."""
    x = jnp.arange(kernel_size, dtype=jnp.float32)
    mean = (kernel_size - 1) / 2.0
    g = jnp.exp(-(((x - mean) / float(sigma)) ** 2) / 2.0)
    return g / jnp.sum(g)


def _gaussian_kernel_2d(kernel_size, sigma):
    """Exactly mirrors GBlur's 2-D kernel construction (dim=2) -- reference only."""
    ks = [kernel_size] * 2
    sigmas = [float(sigma)] * 2
    grids = jnp.meshgrid(
        *[jnp.arange(s, dtype=jnp.float32) for s in ks], indexing="ij"
    )
    k = jnp.float32(1.0)
    for size, std, mgrid in zip(ks, sigmas, grids):
        mean = (size - 1) / 2.0
        k = k * (1.0 / (std * math.sqrt(2.0 * math.pi))) * jnp.exp(
            -(((mgrid - mean) / std) ** 2) / 2.0
        )
    return k / jnp.sum(k)


def _toeplitz(g1d, n_out, n_in, pad):
    """T[o, i] = g1d[i - o + pad] (zero outside the kernel support).

    (T @ x) along the leading axis == 1-D 'same' conv with zero padding; the
    padding is folded into the matrix and never materialized.
    """
    # TODO(synk): for production H,W >> kernel_size, replace this dense (n,n)
    # matrix with a banded (K, n) slab + band-blocked contraction to avoid the
    # ~n/K wasted MACs per output.
    K = g1d.shape[0]
    o = jnp.arange(n_out)[:, None]
    i = jnp.arange(n_in)[None, :]
    idx = i - o + pad
    valid = (idx >= 0) & (idx < K)
    return jnp.where(valid, g1d[jnp.clip(idx, 0, K - 1)], 0.0).astype(jnp.float32)


def _choose_chunk(B, H, W, *, elem_bytes=4, target_bytes=1 << 20, max_bytes=4 << 20):
    """Images per grid step.

    Aims for ~1-4 MiB input blocks while (a) keeping >= 2 grid steps so the
    "parallel" grid axis can shard across v7x's two TensorCores and the
    pipeline has something to overlap, and (b) preferring divisors of B so no
    zero-padded ghost images are blurred.
    """
    img_bytes = H * W * elem_bytes
    cap = max(1, min(B, max_bytes // max(img_bytes, 1)))
    if B >= 2:
        cap = min(cap, max(1, B // 2))  # always leave >= 2 grid steps
    divisors = [d for d in range(1, cap + 1) if B % d == 0]
    bc = divisors[-1] if divisors else 1
    # If the best divisor leaves blocks far below target and a (padded) larger
    # chunk would at least double the block, take the larger chunk.
    if bc * img_bytes < target_bytes and cap >= 2 * bc:
        bc = cap
    Bp = ((B + bc - 1) // bc) * bc
    return bc, Bp


# --------------------------------------------------------------- Pallas kernel
def _blur_kernel(x_ref, gv_ref, gh_ref, o_ref, y_ref):
    # x_ref : (bc, H, W)   chunk of images (one block per grid step)
    # gv_ref: (H, H)       vertical conv matrix   (out_img = gv @ img)
    # gh_ref: (W, W)       horizontal conv matrix (out_img = img @ gh)
    # o_ref : (bc, H, W)   output block
    # y_ref : (bc*H, W)    VMEM scratch for the horizontal-pass intermediate
    bc, H, W = x_ref.shape

    # Horizontal 'same' conv: a single (bc*H, W) @ (W, W) matmul -- the stacked
    # batch fills the MXU M dimension.  Zero padding is folded into gh.
    y_ref[...] = jnp.dot(
        x_ref[...].reshape(bc * H, W),
        gh_ref[...],
        preferred_element_type=jnp.float32,
    )

    # Vertical 'same' conv: per-image (H, H) @ (H, W).  Reads the staged
    # intermediate back one image at a time so it never lives whole in vregs.
    # bc is a trace-time constant -> static unroll.
    for b in range(bc):
        o_ref[b] = jnp.dot(
            gv_ref[...],
            y_ref[pl.ds(b * H, H), :],
            preferred_element_type=jnp.float32,
        ).astype(o_ref.dtype)


def gblur_apply(x, sigma, kernel_size=23):
    """Depthwise gaussian blur == F.conv2d(x, kernel, groups=C, padding=k//2)."""
    N, C, H, W = x.shape
    K = int(kernel_size)
    pad = int(K / 2)
    B = N * C

    # Separable 1-D factor -> small conv matrices (zero padding folded in).
    g = _gaussian_1d(K, sigma)
    gv = _toeplitz(g, H, H, pad)        # (H, H): vertical pass is gv @ img
    gh = _toeplitz(g, W, W, pad).T      # (W, W): horizontal pass is img @ gh

    bc, Bp = _choose_chunk(B, H, W)

    xb = x.astype(jnp.float32).reshape(B, H, W)
    if Bp > B:
        # Only happens when no divisor of B fits the block budget; the few
        # zero ghost images are blurred and discarded.
        xb = jnp.pad(xb, ((0, Bp - B), (0, 0), (0, 0)))

    # Explicit VMEM budget: double-buffered in+out blocks (~4x block) + scratch
    # + both weight buffers + slack; clamped to stay within v7x's 32 MiB scoped
    # limit (64 MiB physical) while never going below the v5e 16 MiB default.
    block_bytes = bc * H * W * 4
    weight_bytes = (H * H + W * W) * 4
    vmem_limit = int(
        min(32 << 20, max(16 << 20, 5 * block_bytes + 4 * weight_bytes + (4 << 20)))
    )

    out3d = pl.pallas_call(
        _blur_kernel,
        out_shape=jax.ShapeDtypeStruct((Bp, H, W), x.dtype),
        grid=(Bp // bc,),
        in_specs=[
            pl.BlockSpec((bc, H, W), lambda i: (i, 0, 0)),
            # Constant block index -> DMA'd once, effectively VMEM-resident.
            pl.BlockSpec((H, H), lambda i: (0, 0)),
            pl.BlockSpec((W, W), lambda i: (0, 0)),
        ],
        out_specs=pl.BlockSpec((bc, H, W), lambda i: (i, 0, 0)),
        scratch_shapes=[pltpu.VMEM((bc * H, W), jnp.float32)],
        compiler_params=pltpu.CompilerParams(
            dimension_semantics=("parallel",),
            vmem_limit_bytes=vmem_limit,
        ),
    )(xb, gv, gh)

    out = out3d[:B] if Bp > B else out3d
    return out.reshape(N, C, H, W).astype(x.dtype)


# ------------------------------------------------------------- module forward
def gblur_forward(x, key, p=0.5, kernel_size=23, sigma_range=(0.1, 2.0)):
    """Deterministic stand-in for GBlur.forward."""
    k1, k2 = jax.random.split(key)
    # TODO(synk): python-side `random.random()` stochasticity replaced with a
    # deterministic host-side JAX PRNG draw; branch decision happens on host.
    if float(jax.random.uniform(k1)) > p:
        return x
    lo, hi = sigma_range
    sigma = float(jax.random.uniform(k2)) * (hi - lo) + lo
    return gblur_apply(x, sigma, kernel_size)


# --------------------------------------------------------------------- driver
def _reference_blur(x, sigma, kernel_size):
    """Pure-JAX reference: depthwise conv2d with the module's exact 2-D kernel."""
    C = x.shape[1]
    K = int(kernel_size)
    pad = int(K / 2)
    k2d = _gaussian_kernel_2d(K, sigma)
    w = jnp.broadcast_to(k2d[None, None], (C, 1, K, K))
    return lax.conv_general_dilated(
        x, w,
        window_strides=(1, 1),
        padding=[(pad, pad), (pad, pad)],
        dimension_numbers=("NCHW", "OIHW", "NCHW"),
        feature_group_count=C,
    )


if __name__ == "__main__":
    key = jax.random.PRNGKey(0)
    kx, kmod = jax.random.split(key)

    N, C, H, W = 2, 4, 16, 16
    kernel_size = 23
    x = jax.random.normal(kx, (N, C, H, W), dtype=jnp.float32)

    # p=1.0 -> the blur branch is always taken (mirrors `random.random() > p`).
    out = gblur_forward(x, kmod, p=1.0, kernel_size=kernel_size)
    out = jax.block_until_ready(out)
    assert out.shape == x.shape and out.dtype == x.dtype

    # Recompute the same sigma the forward used and compare with a reference
    # depthwise conv using the module's exact 2-D kernel construction.
    _, k2 = jax.random.split(kmod)
    sigma = float(jax.random.uniform(k2)) * (2.0 - 0.1) + 0.1
    ref = jax.block_until_ready(_reference_blur(x, sigma, kernel_size))
    err = float(jnp.max(jnp.abs(out - ref)))
    assert err < 1e-4, f"mismatch vs reference: max abs err {err}"

    print("KERNEL_OK")
</pallas_src>

<mosaic_0001>
module attributes {stable_mosaic.version = 11 : i64} {
  func.func @_blur_kernel(%arg0: i32, %arg1: memref<4x16x16xf32, #tpu.memory_space<vmem>>, %arg2: memref<16x16xf32, #tpu.memory_space<vmem>>, %arg3: memref<16x16xf32, #tpu.memory_space<vmem>>, %arg4: memref<4x16x16xf32, #tpu.memory_space<vmem>>, %arg5: memref<64x16xf32, #tpu.memory_space<vmem>>) attributes {dimension_semantics = [#tpu.dimension_semantics<parallel>], iteration_bounds = array<i64: 2>, scalar_prefetch = 0 : i64, scratch_operands = 1 : i64, tpu.core_type = #tpu.core_type<tc>, window_params = [{transform_indices = @transform_0, window_bounds = array<i64: 4, 16, 16>}, {pipeline_mode = #tpu.pipeline_mode<synchronous>, transform_indices = @transform_1, window_bounds = array<i64: 16, 16>}, {pipeline_mode = #tpu.pipeline_mode<synchronous>, transform_indices = @transform_2, window_bounds = array<i64: 16, 16>}, {transform_indices = @transform_3, window_bounds = array<i64: 4, 16, 16>}]} {
    %c0 = arith.constant 0 : index
    %c0_0 = arith.constant 0 : index
    %c0_1 = arith.constant 0 : index
    %0 = vector.load %arg1[%c0, %c0_0, %c0_1] : memref<4x16x16xf32, #tpu.memory_space<vmem>>, vector<4x16x16xf32>
    %1 = vector.shape_cast %0 : vector<4x16x16xf32> to vector<64x16xf32>
    %c0_2 = arith.constant 0 : index
    %c0_3 = arith.constant 0 : index
    %2 = vector.load %arg3[%c0_2, %c0_3] : memref<16x16xf32, #tpu.memory_space<vmem>>, vector<16x16xf32>
    %cst = arith.constant dense<0.000000e+00> : vector<64x16xf32>
    %3 = tpu.matmul %1, %2, %cst {dimension_numbers = #tpu.dot_dimension_numbers<[1], [0], [0], [1], [0, 0, 1, 1], [], []>} : vector<64x16xf32>, vector<16x16xf32>, vector<64x16xf32> -> vector<64x16xf32>
    %c0_4 = arith.constant 0 : index
    %c0_5 = arith.constant 0 : index
    %4 = vector.load %arg5[%c0_4, %c0_5] : memref<64x16xf32, #tpu.memory_space<vmem>>, vector<64x16xf32>
    tpu.vector_store %arg5[%c0_4, %c0_5], %3 {strides = array<i32>} : memref<64x16xf32, #tpu.memory_space<vmem>>, vector<64x16xf32>,
    %c0_6 = arith.constant 0 : index
    %c0_7 = arith.constant 0 : index
    %5 = vector.load %arg2[%c0_6, %c0_7] : memref<16x16xf32, #tpu.memory_space<vmem>>, vector<16x16xf32>
    %c0_8 = arith.constant 0 : index
    %c0_9 = arith.constant 0 : index
    %6 = vector.load %arg5[%c0_8, %c0_9] : memref<64x16xf32, #tpu.memory_space<vmem>>, vector<16x16xf32>
    %cst_10 = arith.constant dense<0.000000e+00> : vector<16x16xf32>
    %7 = tpu.matmul %5, %6, %cst_10 {dimension_numbers = #tpu.dot_dimension_numbers<[1], [0], [0], [1], [0, 0, 1, 1], [], []>} : vector<16x16xf32>, vector<16x16xf32>, vector<16x16xf32> -> vector<16x16xf32>
    %c0_11 = arith.constant 0 : index
    %c0_12 = arith.constant 0 : index
    %c0_13 = arith.constant 0 : index
    %8 = vector.load %arg4[%c0_11, %c0_12, %c0_13] : memref<4x16x16xf32, #tpu.memory_space<vmem>>, vector<1x16x16xf32>
    %9 = vector.shape_cast %8 : vector<1x16x16xf32> to vector<16x16xf32>
    %10 = vector.shape_cast %7 : vector<16x16xf32> to vector<1x16x16xf32>
    tpu.vector_store %arg4[%c0_11, %c0_12, %c0_13], %10 {strides = array<i32>} : memref<4x16x16xf32, #tpu.memory_space<vmem>>, vector<1x16x16xf32>,
    %c0_14 = arith.constant 0 : index
    %c0_15 = arith.constant 0 : index
    %11 = vector.load %arg2[%c0_14, %c0_15] : memref<16x16xf32, #tpu.memory_space<vmem>>, vector<16x16xf32>
    %c16 = arith.constant 16 : index
    %c0_16 = arith.constant 0 : index
    %12 = vector.load %arg5[%c16, %c0_16] : memref<64x16xf32, #tpu.memory_space<vmem>>, vector<16x16xf32>
    %cst_17 = arith.constant dense<0.000000e+00> : vector<16x16xf32>
    %13 = tpu.matmul %11, %12, %cst_17 {dimension_numbers = #tpu.dot_dimension_numbers<[1], [0], [0], [1], [0, 0, 1, 1], [], []>} : vector<16x16xf32>, vector<16x16xf32>, vector<16x16xf32> -> vector<16x16xf32>
    %c1 = arith.constant 1 : index
    %c0_18 = arith.constant 0 : index
    %c0_19 = arith.constant 0 : index
    %14 = vector.load %arg4[%c1, %c0_18, %c0_19] : memref<4x16x16xf32, #tpu.memory_space<vmem>>, vector<1x16x16xf32>
    %15 = vector.shape_cast %14 : vector<1x16x16xf32> to vector<16x16xf32>
    %16 = vector.shape_cast %13 : vector<16x16xf32> to vector<1x16x16xf32>
    tpu.vector_store %arg4[%c1, %c0_18, %c0_19], %16 {strides = array<i32>} : memref<4x16x16xf32, #tpu.memory_space<vmem>>, vector<1x16x16xf32>,
    %c0_20 = arith.constant 0 : index
    %c0_21 = arith.constant 0 : index
    %17 = vector.load %arg2[%c0_20, %c0_21] : memref<16x16xf32, #tpu.memory_space<vmem>>, vector<16x16xf32>
    %c32 = arith.constant 32 : index
    %c0_22 = arith.constant 0 : index
    %18 = vector.load %arg5[%c32, %c0_22] : memref<64x16xf32, #tpu.memory_space<vmem>>, vector<16x16xf32>
    %cst_23 = arith.constant dense<0.000000e+00> : vector<16x16xf32>
    %19 = tpu.matmul %17, %18, %cst_23 {dimension_numbers = #tpu.dot_dimension_numbers<[1], [0], [0], [1], [0, 0, 1, 1], [], []>} : vector<16x16xf32>, vector<16x16xf32>, vector<16x16xf32> -> vector<16x16xf32>
    %c2 = arith.constant 2 : index
    %c0_24 = arith.constant 0 : index
    %c0_25 = arith.constant 0 : index
    %20 = vector.load %arg4[%c2, %c0_24, %c0_25] : memref<4x16x16xf32, #tpu.memory_space<vmem>>, vector<1x16x16xf32>
    %21 = vector.shape_cast %20 : vector<1x16x16xf32> to vector<16x16xf32>
    %22 = vector.shape_cast %19 : vector<16x16xf32> to vector<1x16x16xf32>
    tpu.vector_store %arg4[%c2, %c0_24, %c0_25], %22 {strides = array<i32>} : memref<4x16x16xf32, #tpu.memory_space<vmem>>, vector<1x16x16xf32>,
    %c0_26 = arith.constant 0 : index
    %c0_27 = arith.constant 0 : index
    %23 = vector.load %arg2[%c0_26, %c0_27] : memref<16x16xf32, #tpu.memory_space<vmem>>, vector<16x16xf32>
    %c48 = arith.constant 48 : index
    %c0_28 = arith.constant 0 : index
    %24 = vector.load %arg5[%c48, %c0_28] : memref<64x16xf32, #tpu.memory_space<vmem>>, vector<16x16xf32>
    %cst_29 = arith.constant dense<0.000000e+00> : vector<16x16xf32>
    %25 = tpu.matmul %23, %24, %cst_29 {dimension_numbers = #tpu.dot_dimension_numbers<[1], [0], [0], [1], [0, 0, 1, 1], [], []>} : vector<16x16xf32>, vector<16x16xf32>, vector<16x16xf32> -> vector<16x16xf32>
    %c3 = arith.constant 3 : index
    %c0_30 = arith.constant 0 : index
    %c0_31 = arith.constant 0 : index
    %26 = vector.load %arg4[%c3, %c0_30, %c0_31] : memref<4x16x16xf32, #tpu.memory_space<vmem>>, vector<1x16x16xf32>
    %27 = vector.shape_cast %26 : vector<1x16x16xf32> to vector<16x16xf32>
    %28 = vector.shape_cast %25 : vector<16x16xf32> to vector<1x16x16xf32>
    tpu.vector_store %arg4[%c3, %c0_30, %c0_31], %28 {strides = array<i32>} : memref<4x16x16xf32, #tpu.memory_space<vmem>>, vector<1x16x16xf32>,
    return
  }
  func.func @transform_0(%arg0: i32) -> (i32, i32, i32) {
    %c0_i32 = arith.constant 0 : i32
    %c0_i32_0 = arith.constant 0 : i32
    %c0_i32_1 = arith.constant 0 : i32
    return %arg0, %c0_i32, %c0_i32_0 : i32, i32, i32
  }
  func.func @transform_1(%arg0: i32) -> (i32, i32) {
    %c0_i32 = arith.constant 0 : i32
    %c0_i32_0 = arith.constant 0 : i32
    %c0_i32_1 = arith.constant 0 : i32
    return %c0_i32, %c0_i32_0 : i32, i32
  }
  func.func @transform_2(%arg0: i32) -> (i32, i32) {
    %c0_i32 = arith.constant 0 : i32
    %c0_i32_0 = arith.constant 0 : i32
    %c0_i32_1 = arith.constant 0 : i32
    return %c0_i32, %c0_i32_0 : i32, i32
  }
  func.func @transform_3(%arg0: i32) -> (i32, i32, i32) {
    %c0_i32 = arith.constant 0 : i32
    %c0_i32_0 = arith.constant 0 : i32
    %c0_i32_1 = arith.constant 0 : i32
    return %arg0, %c0_i32, %c0_i32_0 : i32, i32, i32
  }
}

</mosaic_0001>

<llo_original>
// kernel: tpu_custom_call.1
$region0: #{tpu_custom_call.1}
  #allocation0 [shape = 'u32[]', space=smem, size = 0x4, offset = 0x4, fixed_abs, tag = 'smem constant byte address 0x4 - core index']
  #allocation1 [shape = 'u32[144,128]{1,0:T(1,128)}', space=vmem, size = 0x12000, scoped, tag = 'internal scratch']
  #allocation2 [shape = 'f32[64,16]{1,0:T(8,128)}', space=vmem, size = 0x8000, scoped, tag = 'scratch operand']
  %s0 = inlined_call_operand.hbm [shape: f32[8,16,16], index: 0, kind: input, shape index: {}]
  %s1 = inlined_call_operand.hbm [shape: f32[16,16], index: 1, kind: input, shape index: {}]
  %s2 = inlined_call_operand.hbm [shape: f32[16,16], index: 2, kind: input, shape index: {}]
  %s3 = inlined_call_operand.hbm [shape: f32[8,16,16], index: 3, kind: output, shape index: {}]
  %s4 = sld [smem:[#allocation0]]
  $region57: #{tpu_custom_call.1} parent=0
    _
  %s6 = ssub.s32 1, %s4
  %s7 = scalar_select 0, %s6, %s4
  $region1: #{tpu_custom_call.1} parent=0
    #allocation3 [shape = 'u8[65536]{0}', space=vmem, size = 0x10000, scoped, tag = 'input window, operand 0']
    #allocation4 [shape = 's32[2]{0}', space=sflag, size = 0x8, scoped, tag = 'scoped memory for tpu_custom_call.1']
    #allocation5 [shape = 's32[2]{0}', space=sflag, size = 0x8, scoped, tag = 'scoped memory for tpu_custom_call.1']
    #allocation6 [shape = 'u8[8192]{0}', space=vmem, size = 0x2000, scoped, tag = 'input window, operand 1, single buffered']
    #allocation7 [shape = 's32[1]{0}', space=sflag, size = 0x4, scoped, tag = 'scoped memory for tpu_custom_call.1']
    #allocation8 [shape = 'u8[8192]{0}', space=vmem, size = 0x2000, scoped, tag = 'input window, operand 2, single buffered']
    #allocation9 [shape = 'u8[65536]{0}', space=vmem, size = 0x10000, scoped, tag = 'output window, operand 0']
    %8 = vsyncpa [#allocation4], 0
    %s9 = scalar_lea.sflag [#allocation4], 1
    %10 = vsyncpa %s9, 0
    %11 = vsyncpa [#allocation7], 0
    %12 = vsyncpa [#allocation5], 0
    %s13 = scalar_lea.sflag [#allocation5], 1
    %14 = vsyncpa %s13, 0
    loop: start=0, step=1, limit=4
    $region2: #{tpu_custom_call.1} parent=1 // loop_pre_header
      _
    $region3: #{tpu_custom_call.1} parent=1 // loop_header
      %s16 = sphi 0, %s20
      %p17 = scmp.ge.s32.totalorder %s16, 4
      %s26 = sphi 0, %s28
      %s29 = sphi 0, %s26
      %s30 = sphi 0, %s29
      %s46 = sphi 0, %s30
      %s50 = sphi 0, %s50
      %s52 = sphi 0, %s50
      %s53 = sphi 0, %s52
      %s67 = sphi 0, %s53
      %s71 = sphi 0, %s71
      %s73 = sphi 0, %s71
      %s74 = sphi 0, %s73
      %s88 = sphi 0, %s74
      %s94 = sphi 0, %s96
      %s97 = sphi 0, %s94
      %s98 = sphi 0, %s97
      %s114 = sphi 0, %s98
    $region4: #{tpu_custom_call.1} parent=1 // loop_header_branch
      %19 = sbr.rel (%p17) target = $region8
    $region5: #{tpu_custom_call.1} parent=1 // loop_body
      %s21 = ssub.s32 %s16, 1
      %s22 = ssub.s32 %s16, 2
      %s23 = sadd.s32 %s16, 1
      %s24 = ssub.s32 %s16, %s23
      %p25 = scmp.eq.s32.totalorder %s24, 0
      %s27 = sadd.s32 %s26, 1
      %s28 = scalar_select %p25, %s26, %s27
      %p31 = pneg %p25
      %p32 = scmp.eq.s32.totalorder %s16, 1
      %p33 = por %p31, %p32
      %p34 = scmp.ne.s32.totalorder %s26, %s29
      %p35 = scmp.eq.s32.totalorder %s16, 0
      %p36 = por %p34, %p35
      %p37 = scmp.ne.s32.totalorder %s26, %s29
      %p38 = scmp.eq.s32.totalorder %s21, 1
      %p39 = por %p37, %p38
      %p40 = scmp.ne.s32.totalorder %s29, %s30
      %p41 = scmp.eq.s32.totalorder %s21, 0
      %p42 = por %p40, %p41
      %p43 = scmp.ne.s32.totalorder %s29, %s30
      %p44 = scmp.eq.s32.totalorder %s22, 1
      %p45 = por %p43, %p44
      %p47 = scmp.ne.s32.totalorder %s30, %s46
      %p48 = scmp.eq.s32.totalorder %s22, 0
      %p49 = por %p47, %p48
      %s51 = sadd.s32 %s50, 1
      %p54 = scmp.eq.s32.totalorder %s16, 1
      %p55 = scmp.ne.s32.totalorder %s50, %s52
      %p56 = scmp.eq.s32.totalorder %s16, 0
      %p57 = por %p55, %p56
      %p58 = scmp.ne.s32.totalorder %s50, %s52
      %p59 = scmp.eq.s32.totalorder %s21, 1
      %p60 = por %p58, %p59
      %p61 = scmp.ne.s32.totalorder %s52, %s53
      %p62 = scmp.eq.s32.totalorder %s21, 0
      %p63 = por %p61, %p62
      %p64 = scmp.ne.s32.totalorder %s52, %s53
      %p65 = scmp.eq.s32.totalorder %s22, 1
      %p66 = por %p64, %p65
      %p68 = scmp.ne.s32.totalorder %s53, %s67
      %p69 = scmp.eq.s32.totalorder %s22, 0
      %p70 = por %p68, %p69
      %s72 = sadd.s32 %s71, 1
      %p75 = scmp.eq.s32.totalorder %s16, 1
      %p76 = scmp.ne.s32.totalorder %s71, %s73
      %p77 = scmp.eq.s32.totalorder %s16, 0
      %p78 = por %p76, %p77
      %p79 = scmp.ne.s32.totalorder %s71, %s73
      %p80 = scmp.eq.s32.totalorder %s21, 1
      %p81 = por %p79, %p80
      %p82 = scmp.ne.s32.totalorder %s73, %s74
      %p83 = scmp.eq.s32.totalorder %s21, 0
      %p84 = por %p82, %p83
      %p85 = scmp.ne.s32.totalorder %s73, %s74
      %p86 = scmp.eq.s32.totalorder %s22, 1
      %p87 = por %p85, %p86
      %p89 = scmp.ne.s32.totalorder %s74, %s88
      %p90 = scmp.eq.s32.totalorder %s22, 0
      %p91 = por %p89, %p90
      %s92 = ssub.s32 %s16, %s23
      %p93 = scmp.eq.s32.totalorder %s92, 0
      %s95 = sadd.s32 %s94, 1
      %s96 = scalar_select %p93, %s94, %s95
      %p99 = pneg %p93
      %p100 = scmp.eq.s32.totalorder %s16, 1
      %p101 = por %p99, %p100
      %p102 = scmp.ne.s32.totalorder %s94, %s97
      %p103 = scmp.eq.s32.totalorder %s16, 0
      %p104 = por %p102, %p103
      %p105 = scmp.ne.s32.totalorder %s94, %s97
      %p106 = scmp.eq.s32.totalorder %s21, 1
      %p107 = por %p105, %p106
      %p108 = scmp.ne.s32.totalorder %s97, %s98
      %p109 = scmp.eq.s32.totalorder %s21, 0
      %p110 = por %p108, %p109
      %p111 = scmp.ne.s32.totalorder %s97, %s98
      %p112 = scmp.eq.s32.totalorder %s22, 1
      %p113 = por %p111, %p112
      %p115 = scmp.ne.s32.totalorder %s98, %s114
      %p116 = scmp.eq.s32.totalorder %s22, 0
      %p117 = por %p115, %p116
      %p118 = scmp.le.s32.totalorder 1, %s16
      %p119 = scmp.lt.s32.totalorder %s16, 3
      %p120 = pnand %p118, %p119
      %p121 = pneg %p120
      // Predicated region
      $region9: #{tpu_custom_call.1} parent=5 // pred_check
        _
      $region10: #{tpu_custom_call.1} parent=5 // pred_check_branch
        %123 = sbr.rel (%p120) target = $region12
      $region11: #{tpu_custom_call.1} parent=5 // pred_region
        %s124 = ssub.s32 %s16, 1
        // Predicated region
        $region13: #{tpu_custom_call.1} parent=11 // pred_check
          %p125 = pneg %p63
        $region14: #{tpu_custom_call.1} parent=11 // pred_check_branch
          %127 = sbr.rel (%p125) target = $region16
        $region15: #{tpu_custom_call.1} parent=11 // pred_region
          %s129 = ssub.s32 256, 256
          %130 = vsyncadd [#allocation7], %s129
          %s131 = sshll.u32 [#allocation6], 4
          %s132 = int_to_ptr.vmem [resolvable:$true] %s131
          %137 = dma.hbm_to_vmem [thread:$0]  %s1, 256, %s132, [#allocation7], 128, 128, 8
        $region16: #{tpu_custom_call.1} parent=11 // pred_fallthru
          _
        // Predicated region
        $region17: #{tpu_custom_call.1} parent=11 // pred_check
          %p138 = pneg %p84
        $region18: #{tpu_custom_call.1} parent=11 // pred_check_branch
          %140 = sbr.rel (%p138) target = $region20
        $region19: #{tpu_custom_call.1} parent=11 // pred_region
          %s142 = ssub.s32 256, 256
          %143 = vsyncadd [#allocation7], %s142
          %s144 = sshll.u32 [#allocation8], 4
          %s145 = int_to_ptr.vmem [resolvable:$true] %s144
          %150 = dma.hbm_to_vmem [thread:$0]  %s2, 256, %s145, [#allocation7], 128, 128, 8
        $region20: #{tpu_custom_call.1} parent=11 // pred_fallthru
          _
      $region12: #{tpu_custom_call.1} parent=5 // pred_fallthru
        _
      %p151 = scmp.lt.s32.totalorder %s16, 2
      // Predicated region
      $region21: #{tpu_custom_call.1} parent=5 // pred_check
        %p152 = pneg %p151
      $region22: #{tpu_custom_call.1} parent=5 // pred_check_branch
        %154 = sbr.rel (%p152) target = $region24
      $region23: #{tpu_custom_call.1} parent=5 // pred_region
        // Predicated region
        $region25: #{tpu_custom_call.1} parent=23 // pred_check
          %p155 = pneg %p36
        $region26: #{tpu_custom_call.1} parent=23 // pred_check_branch
          %157 = sbr.rel (%p155) target = $region28
        $region27: #{tpu_custom_call.1} parent=23 // pred_region
          %s158 = sand.u32 %s26, 1
          %s159 = scalar_lea.sflag [#allocation4], %s158
          %s160 = sand.u32 %s26, 1
          %s161 = smul.addr %s160, 64
          %s162 = scalar_lea.vmem [#allocation3], %s161
          %s163 = smul.u32 4, %s16
          %s165 = ssub.s32 1024, 1024
          %166 = vsyncadd %s159, %s165
          %s167 = smul.addr %s163, 2
          %s168 = smul.addr %s167, 128
          %s169 = scalar_lea.hbm %s0, %s168
          %s170 = sshll.u32 %s162, 4
          %s171 = int_to_ptr.vmem [resolvable:$true] %s170
          %176 = dma.hbm_to_vmem [thread:$0]  %s169, 1024, %s171, %s159, 128, 128, 8
        $region28: #{tpu_custom_call.1} parent=23 // pred_fallthru
          _
      $region24: #{tpu_custom_call.1} parent=5 // pred_fallthru
        _
      %p177 = scmp.le.s32.totalorder 1, %s16
      %p178 = scmp.lt.s32.totalorder %s16, 3
      %p179 = pnand %p177, %p178
      %p180 = pneg %p179
      // Predicated region
      $region29: #{tpu_custom_call.1} parent=5 // pred_check
        _
      $region30: #{tpu_custom_call.1} parent=5 // pred_check_branch
        %182 = sbr.rel (%p179) target = $region32
      $region31: #{tpu_custom_call.1} parent=5 // pred_region
        %s183 = ssub.s32 %s16, 1
        %s184 = sand.u32 %s29, 1
        %s185 = scalar_lea.sflag [#allocation4], %s184
        %s186 = sand.u32 %s29, 1
        %s187 = smul.addr %s186, 64
        %s188 = scalar_lea.vmem [#allocation3], %s187
        // Predicated region
        $region33: #{tpu_custom_call.1} parent=31 // pred_check
          %p189 = pneg %p42
        $region34: #{tpu_custom_call.1} parent=31 // pred_check_branch
          %191 = sbr.rel (%p189) target = $region36
        $region35: #{tpu_custom_call.1} parent=31 // pred_region
          %192 = dma.done %s185, 1024
        $region36: #{tpu_custom_call.1} parent=31 // pred_fallthru
          _
        // Predicated region
        $region37: #{tpu_custom_call.1} parent=31 // pred_check
          %p193 = pneg %p63
        $region38: #{tpu_custom_call.1} parent=31 // pred_check_branch
          %195 = sbr.rel (%p193) target = $region40
        $region39: #{tpu_custom_call.1} parent=31 // pred_region
          %196 = dma.done [#allocation7], 256
        $region40: #{tpu_custom_call.1} parent=31 // pred_fallthru
          _
        // Predicated region
        $region41: #{tpu_custom_call.1} parent=31 // pred_check
          %p197 = pneg %p84
        $region42: #{tpu_custom_call.1} parent=31 // pred_check_branch
          %199 = sbr.rel (%p197) target = $region44
        $region43: #{tpu_custom_call.1} parent=31 // pred_region
          %200 = dma.done [#allocation7], 256
        $region44: #{tpu_custom_call.1} parent=31 // pred_fallthru
          _
        %s201 = sand.u32 %s29, 1
        %s202 = scalar_lea.sflag [#allocation4], %s201
        %s203 = sand.u32 %s29, 1
        %s204 = smul.addr %s203, 64
        %s205 = scalar_lea.vmem [#allocation3], %s204
        %p206 = pneg %p42
        %p207 = pneg %p39
        %p208 = pneg %p63
        %p209 = pneg %p60
        %p210 = pneg %p84
        %p211 = pneg %p81
        %p212 = pneg %p110
        %p213 = pneg %p107
        %s214 = sand.u32 %s97, 1
        %s215 = scalar_lea.sflag [#allocation5], %s214
        %s216 = sand.u32 %s97, 1
        %s217 = smul.addr %s216, 64
        %s218 = scalar_lea.vmem [#allocation9], %s217
        %s219 = smul.u32 4, %s21
        %s220 = smul.u32 4, %s21
        %v221 = vld [vmem:[%s188] sm:$0xff]
        %v222 = vld [vmem:[%s188 + $0x8] sm:$0xff]
        %v223 = vld [vmem:[%s188 + $0x10] sm:$0xff]
        %v224 = vld [vmem:[%s188 + $0x18] sm:$0xff]
        %v225 = vld [vmem:[%s188 + $0x20] sm:$0xff]
        %v226 = vld [vmem:[%s188 + $0x28] sm:$0xff]
        %v227 = vld [vmem:[%s188 + $0x30] sm:$0xff]
        %v228 = vld [vmem:[%s188 + $0x38] sm:$0xff]
        %v229 = vld [vmem:[#allocation8] sm:$0xff]
        %v230 = vld [vmem:[#allocation8 + $0x8] sm:$0xff]
        %vm231 = vcmask 130048
        %v233 = vsel %vm231, %v221, 0
        %v236 = vsel %vm231, %v222, 0
        %v239 = vsel %vm231, %v223, 0
        %v242 = vsel %vm231, %v224, 0
        %v245 = vsel %vm231, %v225, 0
        %v248 = vsel %vm231, %v226, 0
        %v251 = vsel %vm231, %v227, 0
        %v254 = vsel %vm231, %v228, 0
        %256 = vmatprep.subr.mxu0 0.0
        %257 = vmatpush1.msra.mxu0 0.0
        %258 = vmatprep.subr.mxu0 0.0
        %259 = vmatpush1.msra.mxu0 0.0
        %260 = vmatprep.subr.mxu0 0.0
        %261 = vmatpush1.msra.mxu0 0.0
        %262 = vmatprep.subr.mxu0 0.0
        %263 = vmatpush1.msra.mxu0 0.0
        %264 = vmatprep.subr.mxu0 0.0
        %265 = vmatpush1.msra.mxu0 0.0
        %266 = vmatprep.subr.mxu0 0.0
        %267 = vmatpush1.msra.mxu0 0.0
        %268 = vmatprep.subr.mxu0 0.0
        %269 = vmatpush1.msra.mxu0 0.0
        %270 = vmatprep.subr.mxu0 0.0
        %271 = vmatpush1.msra.mxu0 0.0
        %272 = vmatprep.subr.mxu0 0.0
        %273 = vmatpush1.msra.mxu0 0.0
        %274 = vmatprep.subr.mxu0 0.0
        %275 = vmatpush1.msra.mxu0 0.0
        %276 = vmatprep.subr.mxu0 0.0
        %277 = vmatpush1.msra.mxu0 0.0
        %278 = vmatprep.subr.mxu0 0.0
        %279 = vmatpush1.msra.mxu0 0.0
        %280 = vmatprep.subr.mxu0 0.0
        %281 = vmatpush1.msra.mxu0 0.0
        %282 = vmatprep.subr.mxu0 0.0
        %283 = vmatpush1.msra.mxu0 0.0
        %284 = vmatprep.subr.mxu0 0.0
        %285 = vmatpush1.msra.mxu0 %v230
        %286 = vmatprep.subr.mxu0 0.0
        %287 = vmatpush1.msra.mxu0 %v229
        %288 = vmatprep.subr.mxu0 0.0
        %289 = vmatpush2.msra.mxu0 0.0
        %290 = vmatprep.subr.mxu0 0.0
        %291 = vmatpush2.msra.mxu0 0.0
        %292 = vmatprep.subr.mxu0 0.0
        %293 = vmatpush2.msra.mxu0 0.0
        %294 = vmatprep.subr.mxu0 0.0
        %295 = vmatpush2.msra.mxu0 0.0
        %296 = vmatprep.subr.mxu0 0.0
        %297 = vmatpush2.msra.mxu0 0.0
        %298 = vmatprep.subr.mxu0 0.0
        %299 = vmatpush2.msra.mxu0 0.0
        %300 = vmatprep.subr.mxu0 0.0
        %301 = vmatpush2.msra.mxu0 0.0
        %302 = vmatprep.subr.mxu0 0.0
        %303 = vmatpush2.msra.mxu0 0.0
        %304 = vmatprep.subr.mxu0 0.0
        %305 = vmatpush2.msra.mxu0 0.0
        %306 = vmatprep.subr.mxu0 0.0
        %307 = vmatpush2.msra.mxu0 0.0
        %308 = vmatprep.subr.mxu0 0.0
        %309 = vmatpush2.msra.mxu0 0.0
        %310 = vmatprep.subr.mxu0 0.0
        %311 = vmatpush2.msra.mxu0 0.0
        %312 = vmatprep.subr.mxu0 0.0
        %313 = vmatpush2.msra.mxu0 0.0
        %314 = vmatprep.subr.mxu0 0.0
        %315 = vmatpush2.msra.mxu0 0.0
        %316 = vmatprep.subr.mxu0 0.0
        %317 = vmatpush2.msra.mxu0 0.0
        %318 = vmatprep.subr.mxu0 0.0
        %319 = vmatpush2.msra.mxu0 0.0
        %320 = vmatprep.mubr.f32.mxu0 0.0
        %321 = vmatmul.mubr.f32.gmra.mxu0 %v233
        %v322 = vpop.f32.mrf.mxu0
        %v323 = vadd.f32 0.0, %v322
        %v324 = vpop.f32.mrf.mxu0
        %325 = vmatprep.mubr.f32.mxu0 0.0
        %326 = vmatmul.mubr.f32.gmra.mxu0 %v236
        %v327 = vpop.f32.mrf.mxu0
        %v328 = vadd.f32 0.0, %v327
        %v329 = vpop.f32.mrf.mxu0
        %330 = vmatprep.mubr.f32.mxu0 0.0
        %331 = vmatmul.mubr.f32.gmra.mxu0 %v239
        %v332 = vpop.f32.mrf.mxu0
        %v333 = vadd.f32 0.0, %v332
        %v334 = vpop.f32.mrf.mxu0
        %335 = vmatprep.mubr.f32.mxu0 0.0
        %336 = vmatmul.mubr.f32.gmra.mxu0 %v242
        %v337 = vpop.f32.mrf.mxu0
        %v338 = vadd.f32 0.0, %v337
        %v339 = vpop.f32.mrf.mxu0
        %340 = vmatprep.mubr.f32.mxu0 0.0
        %341 = vmatmul.mubr.f32.gmra.mxu0 %v245
        %v342 = vpop.f32.mrf.mxu0
        %v343 = vadd.f32 0.0, %v342
        %v344 = vpop.f32.mrf.mxu0
        %345 = vmatprep.mubr.f32.mxu0 0.0
        %346 = vmatmul.mubr.f32.gmra.mxu0 %v248
        %v347 = vpop.f32.mrf.mxu0
        %v348 = vadd.f32 0.0, %v347
        %v349 = vpop.f32.mrf.mxu0
        %350 = vmatprep.mubr.f32.mxu0 0.0
        %351 = vmatmul.mubr.f32.gmra.mxu0 %v251
        %v352 = vpop.f32.mrf.mxu0
        %v353 = vadd.f32 0.0, %v352
        %v354 = vpop.f32.mrf.mxu0
        %355 = vmatprep.mubr.f32.mxu0 0.0
        %356 = vmatmul.mubr.f32.gmra.mxu0 %v254
        %v357 = vpop.f32.mrf.mxu0
        %v358 = vadd.f32 0.0, %v357
        %v359 = vpop.f32.mrf.mxu0
        %360 = vdwg.mxu0
        %361 = vst.msk [vmem:[#allocation2] sm:$0xff] %vm231, %v323
        %362 = vst.msk [vmem:[#allocation2 + $0x8] sm:$0xff] %vm231, %v328
        %363 = vst.msk [vmem:[#allocation2 + $0x10] sm:$0xff] %vm231, %v333
        %364 = vst.msk [vmem:[#allocation2 + $0x18] sm:$0xff] %vm231, %v338
        %365 = vst.msk [vmem:[#allocation2 + $0x20] sm:$0xff] %vm231, %v343
        %366 = vst.msk [vmem:[#allocation2 + $0x28] sm:$0xff] %vm231, %v348
        %367 = vst.msk [vmem:[#allocation2 + $0x30] sm:$0xff] %vm231, %v353
        %368 = vst.msk [vmem:[#allocation2 + $0x38] sm:$0xff] %vm231, %v358
        %v369 = vld [vmem:[#allocation6] sm:$0xff]
        %v370 = vld [vmem:[#allocation6 + $0x8] sm:$0xff]
        %v371 = vld [vmem:[#allocation2] sm:$0xff]
        %v372 = vld [vmem:[#allocation2 + $0x8] sm:$0xff]
        %v374 = vsel %vm231, %v369, 0
        %v377 = vsel %vm231, %v370, 0
        %379 = vmatprep.subr.mxu0 0.0
        %380 = vmatpush1.msra.mxu0 0.0
        %381 = vmatprep.subr.mxu0 0.0
        %382 = vmatpush1.msra.mxu0 0.0
        %383 = vmatprep.subr.mxu0 0.0
        %384 = vmatpush1.msra.mxu0 0.0
        %385 = vmatprep.subr.mxu0 0.0
        %386 = vmatpush1.msra.mxu0 0.0
        %387 = vmatprep.subr.mxu0 0.0
        %388 = vmatpush1.msra.mxu0 0.0
        %389 = vmatprep.subr.mxu0 0.0
        %390 = vmatpush1.msra.mxu0 0.0
        %391 = vmatprep.subr.mxu0 0.0
        %392 = vmatpush1.msra.mxu0 0.0
        %393 = vmatprep.subr.mxu0 0.0
        %394 = vmatpush1.msra.mxu0 0.0
        %395 = vmatprep.subr.mxu0 0.0
        %396 = vmatpush1.msra.mxu0 0.0
        %397 = vmatprep.subr.mxu0 0.0
        %398 = vmatpush1.msra.mxu0 0.0
        %399 = vmatprep.subr.mxu0 0.0
        %400 = vmatpush1.msra.mxu0 0.0
        %401 = vmatprep.subr.mxu0 0.0
        %402 = vmatpush1.msra.mxu0 0.0
        %403 = vmatprep.subr.mxu0 0.0
        %404 = vmatpush1.msra.mxu0 0.0
        %405 = vmatprep.subr.mxu0 0.0
        %406 = vmatpush1.msra.mxu0 0.0
        %407 = vmatprep.subr.mxu0 0.0
        %408 = vmatpush1.msra.mxu0 %v372
        %409 = vmatprep.subr.mxu0 0.0
        %410 = vmatpush1.msra.mxu0 %v371
        %411 = vmatprep.subr.mxu0 0.0
        %412 = vmatpush2.msra.mxu0 0.0
        %413 = vmatprep.subr.mxu0 0.0
        %414 = vmatpush2.msra.mxu0 0.0
        %415 = vmatprep.subr.mxu0 0.0
        %416 = vmatpush2.msra.mxu0 0.0
        %417 = vmatprep.subr.mxu0 0.0
        %418 = vmatpush2.msra.mxu0 0.0
        %419 = vmatprep.subr.mxu0 0.0
        %420 = vmatpush2.msra.mxu0 0.0
        %421 = vmatprep.subr.mxu0 0.0
        %422 = vmatpush2.msra.mxu0 0.0
        %423 = vmatprep.subr.mxu0 0.0
        %424 = vmatpush2.msra.mxu0 0.0
        %425 = vmatprep.subr.mxu0 0.0
        %426 = vmatpush2.msra.mxu0 0.0
        %427 = vmatprep.subr.mxu0 0.0
        %428 = vmatpush2.msra.mxu0 0.0
        %429 = vmatprep.subr.mxu0 0.0
        %430 = vmatpush2.msra.mxu0 0.0
        %431 = vmatprep.subr.mxu0 0.0
        %432 = vmatpush2.msra.mxu0 0.0
        %433 = vmatprep.subr.mxu0 0.0
        %434 = vmatpush2.msra.mxu0 0.0
        %435 = vmatprep.subr.mxu0 0.0
        %436 = vmatpush2.msra.mxu0 0.0
        %437 = vmatprep.subr.mxu0 0.0
        %438 = vmatpush2.msra.mxu0 0.0
        %439 = vmatprep.subr.mxu0 0.0
        %440 = vmatpush2.msra.mxu0 0.0
        %441 = vmatprep.subr.mxu0 0.0
        %442 = vmatpush2.msra.mxu0 0.0
        %443 = vmatprep.mubr.f32.mxu0 0.0
        %444 = vmatmul.mubr.f32.gmra.mxu0 %v374
        %v445 = vpop.f32.mrf.mxu0
        %v446 = vadd.f32 0.0, %v445
        %v447 = vpop.f32.mrf.mxu0
        %448 = vmatprep.mubr.f32.mxu0 0.0
        %449 = vmatmul.mubr.f32.gmra.mxu0 %v377
        %v450 = vpop.f32.mrf.mxu0
        %v451 = vadd.f32 0.0, %v450
        %v452 = vpop.f32.mrf.mxu0
        %453 = vdwg.mxu0
        %454 = vst.msk [vmem:[%s218] sm:$0xff] %vm231, %v446
        %455 = vst.msk [vmem:[%s218 + $0x8] sm:$0xff] %vm231, %v451
        %v456 = vld [vmem:[#allocation6] sm:$0xff]
        %v457 = vld [vmem:[#allocation6 + $0x8] sm:$0xff]
        %v458 = vld [vmem:[#allocation2 + $0x10] sm:$0xff]
        %v459 = vld [vmem:[#allocation2 + $0x18] sm:$0xff]
        %v461 = vsel %vm231, %v456, 0
        %v464 = vsel %vm231, %v457, 0
        %466 = vmatprep.subr.mxu0 0.0
        %467 = vmatpush1.msra.mxu0 0.0
        %468 = vmatprep.subr.mxu0 0.0
        %469 = vmatpush1.msra.mxu0 0.0
        %470 = vmatprep.subr.mxu0 0.0
        %471 = vmatpush1.msra.mxu0 0.0
        %472 = vmatprep.subr.mxu0 0.0
        %473 = vmatpush1.msra.mxu0 0.0
        %474 = vmatprep.subr.mxu0 0.0
        %475 = vmatpush1.msra.mxu0 0.0
        %476 = vmatprep.subr.mxu0 0.0
        %477 = vmatpush1.msra.mxu0 0.0
        %478 = vmatprep.subr.mxu0 0.0
        %479 = vmatpush1.msra.mxu0 0.0
        %480 = vmatprep.subr.mxu0 0.0
        %481 = vmatpush1.msra.mxu0 0.0
        %482 = vmatprep.subr.mxu0 0.0
        %483 = vmatpush1.msra.mxu0 0.0
        %484 = vmatprep.subr.mxu0 0.0
        %485 = vmatpush1.msra.mxu0 0.0
        %486 = vmatprep.subr.mxu0 0.0
        %487 = vmatpush1.msra.mxu0 0.0
        %488 = vmatprep.subr.mxu0 0.0
        %489 = vmatpush1.msra.mxu0 0.0
        %490 = vmatprep.subr.mxu0 0.0
        %491 = vmatpush1.msra.mxu0 0.0
        %492 = vmatprep.subr.mxu0 0.0
        %493 = vmatpush1.msra.mxu0 0.0
        %494 = vmatprep.subr.mxu0 0.0
        %495 = vmatpush1.msra.mxu0 %v459
        %496 = vmatprep.subr.mxu0 0.0
        %497 = vmatpush1.msra.mxu0 %v458
        %498 = vmatprep.subr.mxu0 0.0
        %499 = vmatpush2.msra.mxu0 0.0
        %500 = vmatprep.subr.mxu0 0.0
        %501 = vmatpush2.msra.mxu0 0.0
        %502 = vmatprep.subr.mxu0 0.0
        %503 = vmatpush2.msra.mxu0 0.0
        %504 = vmatprep.subr.mxu0 0.0
        %505 = vmatpush2.msra.mxu0 0.0
        %506 = vmatprep.subr.mxu0 0.0
        %507 = vmatpush2.msra.mxu0 0.0
        %508 = vmatprep.subr.mxu0 0.0
        %509 = vmatpush2.msra.mxu0 0.0
        %510 = vmatprep.subr.mxu0 0.0
        %511 = vmatpush2.msra.mxu0 0.0
        %512 = vmatprep.subr.mxu0 0.0
        %513 = vmatpush2.msra.mxu0 0.0
        %514 = vmatprep.subr.mxu0 0.0
        %515 = vmatpush2.msra.mxu0 0.0
        %516 = vmatprep.subr.mxu0 0.0
        %517 = vmatpush2.msra.mxu0 0.0
        %518 = vmatprep.subr.mxu0 0.0
        %519 = vmatpush2.msra.mxu0 0.0
        %520 = vmatprep.subr.mxu0 0.0
        %521 = vmatpush2.msra.mxu0 0.0
        %522 = vmatprep.subr.mxu0 0.0
        %523 = vmatpush2.msra.mxu0 0.0
        %524 = vmatprep.subr.mxu0 0.0
        %525 = vmatpush2.msra.mxu0 0.0
        %526 = vmatprep.subr.mxu0 0.0
        %527 = vmatpush2.msra.mxu0 0.0
        %528 = vmatprep.subr.mxu0 0.0
        %529 = vmatpush2.msra.mxu0 0.0
        %530 = vmatprep.mubr.f32.mxu0 0.0
        %531 = vmatmul.mubr.f32.gmra.mxu0 %v461
        %v532 = vpop.f32.mrf.mxu0
        %v533 = vadd.f32 0.0, %v532
        %v534 = vpop.f32.mrf.mxu0
        %535 = vmatprep.mubr.f32.mxu0 0.0
        %536 = vmatmul.mubr.f32.gmra.mxu0 %v464
        %v537 = vpop.f32.mrf.mxu0
        %v538 = vadd.f32 0.0, %v537
        %v539 = vpop.f32.mrf.mxu0
        %540 = vdwg.mxu0
        %s541 = scalar_lea.vmem %s218, 16 [#allocation9]
        %542 = vst.msk [vmem:[%s541] sm:$0xff] %vm231, %v533
        %543 = vst.msk [vmem:[%s541 + $0x8] sm:$0xff] %vm231, %v538
        %v544 = vld [vmem:[#allocation6] sm:$0xff]
        %v545 = vld [vmem:[#allocation6 + $0x8] sm:$0xff]
        %v546 = vld [vmem:[#allocation2 + $0x20] sm:$0xff]
        %v547 = vld [vmem:[#allocation2 + $0x28] sm:$0xff]
        %v549 = vsel %vm231, %v544, 0
        %v552 = vsel %vm231, %v545, 0
        %554 = vmatprep.subr.mxu0 0.0
        %555 = vmatpush1.msra.mxu0 0.0
        %556 = vmatprep.subr.mxu0 0.0
        %557 = vmatpush1.msra.mxu0 0.0
        %558 = vmatprep.subr.mxu0 0.0
        %559 = vmatpush1.msra.mxu0 0.0
        %560 = vmatprep.subr.mxu0 0.0
        %561 = vmatpush1.msra.mxu0 0.0
        %562 = vmatprep.subr.mxu0 0.0
        %563 = vmatpush1.msra.mxu0 0.0
        %564 = vmatprep.subr.mxu0 0.0
        %565 = vmatpush1.msra.mxu0 0.0
        %566 = vmatprep.subr.mxu0 0.0
        %567 = vmatpush1.msra.mxu0 0.0
        %568 = vmatprep.subr.mxu0 0.0
        %569 = vmatpush1.msra.mxu0 0.0
        %570 = vmatprep.subr.mxu0 0.0
        %571 = vmatpush1.msra.mxu0 0.0
        %572 = vmatprep.subr.mxu0 0.0
        %573 = vmatpush1.msra.mxu0 0.0
        %574 = vmatprep.subr.mxu0 0.0
        %575 = vmatpush1.msra.mxu0 0.0
        %576 = vmatprep.subr.mxu0 0.0
        %577 = vmatpush1.msra.mxu0 0.0
        %578 = vmatprep.subr.mxu0 0.0
        %579 = vmatpush1.msra.mxu0 0.0
        %580 = vmatprep.subr.mxu0 0.0
        %581 = vmatpush1.msra.mxu0 0.0
        %582 = vmatprep.subr.mxu0 0.0
        %583 = vmatpush1.msra.mxu0 %v547
        %584 = vmatprep.subr.mxu0 0.0
        %585 = vmatpush1.msra.mxu0 %v546
        %586 = vmatprep.subr.mxu0 0.0
        %587 = vmatpush2.msra.mxu0 0.0
        %588 = vmatprep.subr.mxu0 0.0
        %589 = vmatpush2.msra.mxu0 0.0
        %590 = vmatprep.subr.mxu0 0.0
        %591 = vmatpush2.msra.mxu0 0.0
        %592 = vmatprep.subr.mxu0 0.0
        %593 = vmatpush2.msra.mxu0 0.0
        %594 = vmatprep.subr.mxu0 0.0
        %595 = vmatpush2.msra.mxu0 0.0
        %596 = vmatprep.subr.mxu0 0.0
        %597 = vmatpush2.msra.mxu0 0.0
        %598 = vmatprep.subr.mxu0 0.0
        %599 = vmatpush2.msra.mxu0 0.0
        %600 = vmatprep.subr.mxu0 0.0
        %601 = vmatpush2.msra.mxu0 0.0
        %602 = vmatprep.subr.mxu0 0.0
        %603 = vmatpush2.msra.mxu0 0.0
        %604 = vmatprep.subr.mxu0 0.0
        %605 = vmatpush2.msra.mxu0 0.0
        %606 = vmatprep.subr.mxu0 0.0
        %607 = vmatpush2.msra.mxu0 0.0
        %608 = vmatprep.subr.mxu0 0.0
        %609 = vmatpush2.msra.mxu0 0.0
        %610 = vmatprep.subr.mxu0 0.0
        %611 = vmatpush2.msra.mxu0 0.0
        %612 = vmatprep.subr.mxu0 0.0
        %613 = vmatpush2.msra.mxu0 0.0
        %614 = vmatprep.subr.mxu0 0.0
        %615 = vmatpush2.msra.mxu0 0.0
        %616 = vmatprep.subr.mxu0 0.0
        %617 = vmatpush2.msra.mxu0 0.0
        %618 = vmatprep.mubr.f32.mxu0 0.0
        %619 = vmatmul.mubr.f32.gmra.mxu0 %v549
        %v620 = vpop.f32.mrf.mxu0
        %v621 = vadd.f32 0.0, %v620
        %v622 = vpop.f32.mrf.mxu0
        %623 = vmatprep.mubr.f32.mxu0 0.0
        %624 = vmatmul.mubr.f32.gmra.mxu0 %v552
        %v625 = vpop.f32.mrf.mxu0
        %v626 = vadd.f32 0.0, %v625
        %v627 = vpop.f32.mrf.mxu0
        %628 = vdwg.mxu0
        %s629 = scalar_lea.vmem %s218, 32 [#allocation9]
        %630 = vst.msk [vmem:[%s629] sm:$0xff] %vm231, %v621
        %631 = vst.msk [vmem:[%s629 + $0x8] sm:$0xff] %vm231, %v626
        %v632 = vld [vmem:[#allocation6] sm:$0xff]
        %v633 = vld [vmem:[#allocation6 + $0x8] sm:$0xff]
        %v634 = vld [vmem:[#allocation2 + $0x30] sm:$0xff]
        %v635 = vld [vmem:[#allocation2 + $0x38] sm:$0xff]
        %v637 = vsel %vm231, %v632, 0
        %v640 = vsel %vm231, %v633, 0
        %642 = vmatprep.subr.mxu0 0.0
        %643 = vmatpush1.msra.mxu0 0.0
        %644 = vmatprep.subr.mxu0 0.0
        %645 = vmatpush1.msra.mxu0 0.0
        %646 = vmatprep.subr.mxu0 0.0
        %647 = vmatpush1.msra.mxu0 0.0
        %648 = vmatprep.subr.mxu0 0.0
        %649 = vmatpush1.msra.mxu0 0.0
        %650 = vmatprep.subr.mxu0 0.0
        %651 = vmatpush1.msra.mxu0 0.0
        %652 = vmatprep.subr.mxu0 0.0
        %653 = vmatpush1.msra.mxu0 0.0
        %654 = vmatprep.subr.mxu0 0.0
        %655 = vmatpush1.msra.mxu0 0.0
        %656 = vmatprep.subr.mxu0 0.0
        %657 = vmatpush1.msra.mxu0 0.0
        %658 = vmatprep.subr.mxu0 0.0
        %659 = vmatpush1.msra.mxu0 0.0
        %660 = vmatprep.subr.mxu0 0.0
        %661 = vmatpush1.msra.mxu0 0.0
        %662 = vmatprep.subr.mxu0 0.0
        %663 = vmatpush1.msra.mxu0 0.0
        %664 = vmatprep.subr.mxu0 0.0
        %665 = vmatpush1.msra.mxu0 0.0
        %666 = vmatprep.subr.mxu0 0.0
        %667 = vmatpush1.msra.mxu0 0.0
        %668 = vmatprep.subr.mxu0 0.0
        %669 = vmatpush1.msra.mxu0 0.0
        %670 = vmatprep.subr.mxu0 0.0
        %671 = vmatpush1.msra.mxu0 %v635
        %672 = vmatprep.subr.mxu0 0.0
        %673 = vmatpush1.msra.mxu0 %v634
        %674 = vmatprep.subr.mxu0 0.0
        %675 = vmatpush2.msra.mxu0 0.0
        %676 = vmatprep.subr.mxu0 0.0
        %677 = vmatpush2.msra.mxu0 0.0
        %678 = vmatprep.subr.mxu0 0.0
        %679 = vmatpush2.msra.mxu0 0.0
        %680 = vmatprep.subr.mxu0 0.0
        %681 = vmatpush2.msra.mxu0 0.0
        %682 = vmatprep.subr.mxu0 0.0
        %683 = vmatpush2.msra.mxu0 0.0
        %684 = vmatprep.subr.mxu0 0.0
        %685 = vmatpush2.msra.mxu0 0.0
        %686 = vmatprep.subr.mxu0 0.0
        %687 = vmatpush2.msra.mxu0 0.0
        %688 = vmatprep.subr.mxu0 0.0
        %689 = vmatpush2.msra.mxu0 0.0
        %690 = vmatprep.subr.mxu0 0.0
        %691 = vmatpush2.msra.mxu0 0.0
        %692 = vmatprep.subr.mxu0 0.0
        %693 = vmatpush2.msra.mxu0 0.0
        %694 = vmatprep.subr.mxu0 0.0
        %695 = vmatpush2.msra.mxu0 0.0
        %696 = vmatprep.subr.mxu0 0.0
        %697 = vmatpush2.msra.mxu0 0.0
        %698 = vmatprep.subr.mxu0 0.0
        %699 = vmatpush2.msra.mxu0 0.0
        %700 = vmatprep.subr.mxu0 0.0
        %701 = vmatpush2.msra.mxu0 0.0
        %702 = vmatprep.subr.mxu0 0.0
        %703 = vmatpush2.msra.mxu0 0.0
        %704 = vmatprep.subr.mxu0 0.0
        %705 = vmatpush2.msra.mxu0 0.0
        %706 = vmatprep.mubr.f32.mxu0 0.0
        %707 = vmatmul.mubr.f32.gmra.mxu0 %v637
        %v708 = vpop.f32.mrf.mxu0
        %v709 = vadd.f32 0.0, %v708
        %v710 = vpop.f32.mrf.mxu0
        %711 = vmatprep.mubr.f32.mxu0 0.0
        %712 = vmatmul.mubr.f32.gmra.mxu0 %v640
        %v713 = vpop.f32.mrf.mxu0
        %v714 = vadd.f32 0.0, %v713
        %v715 = vpop.f32.mrf.mxu0
        %716 = vdwg.mxu0
        %s717 = scalar_lea.vmem %s218, 48 [#allocation9]
        %718 = vst.msk [vmem:[%s717] sm:$0xff] %vm231, %v709
        %719 = vst.msk [vmem:[%s717 + $0x8] sm:$0xff] %vm231, %v714
        %s720 = sand.u32 %s97, 1
        %s721 = scalar_lea.sflag [#allocation5], %s720
        %s722 = sand.u32 %s97, 1
        %s723 = smul.addr %s722, 64
        %s724 = scalar_lea.vmem [#allocation9], %s723
        // Predicated region
        $region45: #{tpu_custom_call.1} parent=31 // pred_check
          %p725 = pneg %p107
        $region46: #{tpu_custom_call.1} parent=31 // pred_check_branch
          %727 = sbr.rel (%p725) target = $region48
        $region47: #{tpu_custom_call.1} parent=31 // pred_region
          %s728 = smul.u32 4, %s21
          %s730 = ssub.s32 1024, 1024
          %731 = vsyncadd %s721, %s730
          %s732 = smul.addr %s728, 2
          %s733 = smul.addr %s732, 128
          %s734 = scalar_lea.hbm %s3, %s733
          %s735 = sshll.u32 %s724, 4
          %s736 = int_to_ptr.vmem [resolvable:$true] %s735
          %741 = dma.vmem_to_hbm [thread:$0]  %s736, 1024, %s734, %s721, 128, 128, 8
        $region48: #{tpu_custom_call.1} parent=31 // pred_fallthru
          _
      $region32: #{tpu_custom_call.1} parent=5 // pred_fallthru
        _
      %p742 = scmp.le.s32.totalorder 2, %s16
      // Predicated region
      $region49: #{tpu_custom_call.1} parent=5 // pred_check
        %p743 = pneg %p742
      $region50: #{tpu_custom_call.1} parent=5 // pred_check_branch
        %745 = sbr.rel (%p743) target = $region52
      $region51: #{tpu_custom_call.1} parent=5 // pred_region
        %s746 = ssub.s32 %s16, 2
        // Predicated region
        $region53: #{tpu_custom_call.1} parent=51 // pred_check
          %p747 = pneg %p113
        $region54: #{tpu_custom_call.1} parent=51 // pred_check_branch
          %749 = sbr.rel (%p747) target = $region56
        $region55: #{tpu_custom_call.1} parent=51 // pred_region
          %s750 = sand.u32 %s98, 1
          %s751 = scalar_lea.sflag [#allocation5], %s750
          %s752 = sand.u32 %s98, 1
          %s753 = smul.addr %s752, 64
          %s754 = scalar_lea.vmem [#allocation9], %s753
          %755 = dma.done %s751, 1024
        $region56: #{tpu_custom_call.1} parent=51 // pred_fallthru
          _
      $region52: #{tpu_custom_call.1} parent=5 // pred_fallthru
        _
    $region6: #{tpu_custom_call.1} parent=1 // loop_footer
      %s20 = sadd.s32 1, %s16
    $region7: #{tpu_custom_call.1} parent=1 // loop_footer_branch
      %15 = sbr.rel target = $region3
    $region8: #{tpu_custom_call.1} parent=1 // loop_exit
      _
    %756 = vsyncpa [#allocation4], 1
    %s757 = scalar_lea.sflag [#allocation4], 1
    %758 = vsyncpa %s757, 1
    %759 = vsyncpa [#allocation7], 1
    %760 = vsyncpa [#allocation5], 1
    %s761 = scalar_lea.sflag [#allocation5], 1
    %762 = vsyncpa %s761, 1

</llo_original>
